<compile_context>
chip_gen: v6e
topology: v6e:2x2x1
jax: 0.10.0
libtpu: 0.0.40
codegen_flags: <defaults>
</compile_context>

<pallas_src>
import functools

import jax
import jax.numpy as jnp
from jax.experimental import pallas as pl
from jax.experimental.pallas import tpu as pltpu


def _round_up(x, mult):
    return ((x + mult - 1) // mult) * mult


def _vmem_capacity_bytes():
    """Per-core VMEM capacity; conservative fallback works on every generation."""
    try:
        info = pltpu.get_tpu_info()
        cap = int(getattr(info, "vmem_capacity_bytes", 0) or 0)
        if cap > 0:
            # Clamp to sane per-core values (v7x: 64 MiB, v5e/v6e: 128 MiB).
            return max(32 * 1024 * 1024, min(cap, 128 * 1024 * 1024))
    except Exception:
        pass
    return 64 * 1024 * 1024  # safe everywhere (v7x per-TC VMEM)


def _choose_tiles(m, in_dim, rank, n_pad, x_bytes, w_bytes, budget):
    """Pick (tm, tn) so double-buffered x/out tiles + weights fit the VMEM budget."""

    def cost(tm, tn):
        return (2 * tm * in_dim * x_bytes      # x tile (double-buffered)
                + 2 * tm * tn * x_bytes        # out tile (double-buffered)
                + 2 * in_dim * rank * w_bytes  # wa (resident, still 2 buffers)
                + 2 * rank * tn * w_bytes)     # wb N tile

    m8 = _round_up(m, 8)
    if m8 <= 512:
        # Small problem: take the whole (8-aligned) M as one block.
        tm_cands = [m8]
    else:
        # Streaming sweet spot ~512 rows; shrink only if VMEM-constrained.
        tm_cands = [512, 256, 128, 64, 32, 16, 8]

    tn_cands = [n_pad] + [t for t in (4096, 2048, 1024, 512, 256, 128)
                          if t < n_pad and n_pad % t == 0]

    # Prefer a large M tile (big x DMAs), then the widest lane-dense N tile
    # that fits the budget; mem-bound kernel, so tiling is the whole game.
    for tm in tm_cands:
        for tn in tn_cands:
            if cost(tm, tn) <= budget:
                return tm, tn
    return tm_cands[-1], tn_cands[-1]


def _lora_kernel(x_ref, wa_ref, wb_ref, scale_ref, o_ref):
    # First matmul on the MXU, f32 accumulation: (tm, in_dim) @ (in_dim, rank).
    h = jnp.dot(x_ref[...], wa_ref[...], preferred_element_type=jnp.float32)
    # Scale the rank-sized intermediate: out_dim/rank fewer VPU multiplies than
    # scaling the output tile, and keeps the epilogue a pure cast + store.
    h = h * scale_ref[0]
    # Second matmul kept in f32 (K = rank is tiny, so the extra MXU passes are
    # negligible and we avoid downcasting the accumulator).
    y = jnp.dot(h, wb_ref[...].astype(jnp.float32),
                preferred_element_type=jnp.float32)
    o_ref[...] = y.astype(o_ref.dtype)


def lora_forward(x, wa, wb, scale):
    """LoRA forward: (x @ wa @ wb) * scale.

    x: (..., in_dim); wa: (in_dim, rank); wb: (rank, out_dim).
    Returns an array of shape (..., out_dim).
    """
    in_dim, rank = wa.shape
    rank2, out_dim = wb.shape
    assert rank == rank2 and x.shape[-1] == in_dim

    lead = x.shape[:-1]
    x2d = x.reshape(-1, in_dim)
    m = x2d.shape[0]

    x_bytes = jnp.dtype(x.dtype).itemsize
    w_bytes = jnp.dtype(wa.dtype).itemsize

    cap = _vmem_capacity_bytes()
    budget = int(cap * 0.7)  # leave headroom for compiler scratch / semaphores

    n_pad = _round_up(out_dim, 128)  # lane-dense output stores (no vst.msk)
    tm, tn = _choose_tiles(m, in_dim, rank, n_pad, x_bytes, w_bytes, budget)
    m_pad = _round_up(m, tm)         # handle ragged M by zero-padding rows

    if m_pad != m:
        x2d = jnp.pad(x2d, ((0, m_pad - m), (0, 0)))
    if n_pad != out_dim:
        wb = jnp.pad(wb, ((0, 0), (0, n_pad - out_dim)))

    scale_arr = jnp.asarray([scale], dtype=jnp.float32)

    # N axis innermost: x is only re-DMA'd when its block index changes, so the
    # x tile stays resident across the out_dim loop.
    grid = (m_pad // tm, n_pad // tn)

    out = pl.pallas_call(
        _lora_kernel,
        out_shape=jax.ShapeDtypeStruct((m_pad, n_pad), x.dtype),
        grid_spec=pltpu.PrefetchScalarGridSpec(
            num_scalar_prefetch=0,
            grid=grid,
            in_specs=[
                pl.BlockSpec((tm, in_dim), lambda i, j: (i, 0)),    # x tile
                pl.BlockSpec((in_dim, rank), lambda i, j: (0, 0)),  # wa (resident)
                pl.BlockSpec((rank, tn), lambda i, j: (0, j)),      # wb N tile
                pl.BlockSpec(memory_space=pltpu.SMEM),              # scale scalar
            ],
            out_specs=pl.BlockSpec((tm, tn), lambda i, j: (i, j)),
        ),
        compiler_params=pltpu.CompilerParams(
            dimension_semantics=("parallel", "parallel"),
            vmem_limit_bytes=budget,
        ),
    )(x2d, wa, wb, scale_arr)

    out = out[:m, :out_dim]
    return out.reshape(*lead, out_dim)


def init_lora_params(key, in_dim, out_dim, rank, dtype=jnp.float32):
    """Matches PyTorch init: A ~ N(0, 0.02), B = 0."""
    a_w = 0.02 * jax.random.normal(key, (rank, in_dim), dtype=dtype)  # lora_A.weight
    b_w = jnp.zeros((out_dim, rank), dtype=dtype)                     # lora_B.weight
    return a_w.T, b_w.T  # stored as (in_dim, rank), (rank, out_dim)


if __name__ == "__main__":
    # --- Small shapes matching the module's forward on (batch, seq, in_dim) ---
    batch, seq, in_dim, out_dim, rank, alpha = 2, 8, 32, 32, 8, 16.0
    scale = alpha / rank

    key = jax.random.PRNGKey(0)
    kx, kw = jax.random.split(key)
    x = jax.random.normal(kx, (batch, seq, in_dim), dtype=jnp.float32)
    wa, wb = init_lora_params(kw, in_dim, out_dim, rank)

    # With the reference init lora_B == 0, so output is exactly zero.  Also test
    # a nonzero B to actually exercise the second matmul.
    wb_nonzero = 0.02 * jax.random.normal(jax.random.PRNGKey(1), wb.shape, wb.dtype)

    fwd = jax.jit(functools.partial(lora_forward, scale=scale))

    # Zero-init case (exact module semantics).
    y0 = jax.block_until_ready(fwd(x, wa, wb))
    assert y0.shape == (batch, seq, out_dim)
    assert jnp.allclose(y0, 0.0)

    # Nonzero-B case vs plain-JAX reference.
    y = jax.block_until_ready(fwd(x, wa, wb_nonzero))
    ref = (x @ wa @ wb_nonzero) * scale
    assert jnp.allclose(y, ref, atol=1e-5, rtol=1e-5), float(jnp.max(jnp.abs(y - ref)))

    # --- Second check: ragged M + non-128 out_dim to exercise tiling/padding ---
    b2, s2, in2, out2, r2, a2 = 2, 320, 256, 200, 16, 32.0  # M = 640 -> tm=512, m_pad=1024
    sc2 = a2 / r2
    k1, k2, k3 = jax.random.split(jax.random.PRNGKey(2), 3)
    x2 = jax.random.normal(k1, (b2, s2, in2), dtype=jnp.float32)
    wa2 = 0.02 * jax.random.normal(k2, (in2, r2), dtype=jnp.float32)
    wb2 = 0.02 * jax.random.normal(k3, (r2, out2), dtype=jnp.float32)

    y2 = jax.block_until_ready(jax.jit(functools.partial(lora_forward, scale=sc2))(x2, wa2, wb2))
    ref2 = (x2 @ wa2 @ wb2) * sc2
    assert y2.shape == (b2, s2, out2)
    assert jnp.allclose(y2, ref2, atol=1e-4, rtol=1e-4), float(jnp.max(jnp.abs(y2 - ref2)))

    print("KERNEL_OK")
</pallas_src>

<mosaic_0001>
module attributes {stable_mosaic.version = 11 : i64} {
  func.func @_lora_kernel(%arg0: i32, %arg1: i32, %arg2: memref<16x32xf32, #tpu.memory_space<vmem>>, %arg3: memref<32x8xf32, #tpu.memory_space<vmem>>, %arg4: memref<8x128xf32, #tpu.memory_space<vmem>>, %arg5: memref<1xf32, #tpu.memory_space<smem>>, %arg6: memref<16x128xf32, #tpu.memory_space<vmem>>) attributes {dimension_semantics = [#tpu.dimension_semantics<parallel>, #tpu.dimension_semantics<parallel>], iteration_bounds = array<i64: 1, 1>, scalar_prefetch = 0 : i64, scratch_operands = 0 : i64, tpu.core_type = #tpu.core_type<tc>, window_params = [{transform_indices = @transform_0, window_bounds = array<i64: 16, 32>}, {pipeline_mode = #tpu.pipeline_mode<synchronous>, transform_indices = @transform_1, window_bounds = array<i64: 32, 8>}, {transform_indices = @transform_2, window_bounds = array<i64: 8, 128>}, {transform_indices = @transform_3, window_bounds = array<i64: 1>}, {transform_indices = @transform_4, window_bounds = array<i64: 16, 128>}]} {
    %c0 = arith.constant 0 : index
    %c0_0 = arith.constant 0 : index
    %0 = vector.load %arg2[%c0, %c0_0] : memref<16x32xf32, #tpu.memory_space<vmem>>, vector<16x32xf32>
    %c0_1 = arith.constant 0 : index
    %c0_2 = arith.constant 0 : index
    %1 = vector.load %arg3[%c0_1, %c0_2] : memref<32x8xf32, #tpu.memory_space<vmem>>, vector<32x8xf32>
    %cst = arith.constant dense<0.000000e+00> : vector<16x8xf32>
    %2 = tpu.matmul %0, %1, %cst {dimension_numbers = #tpu.dot_dimension_numbers<[1], [0], [0], [1], [0, 0, 1, 1], [], []>} : vector<16x32xf32>, vector<32x8xf32>, vector<16x8xf32> -> vector<16x8xf32>
    %c0_3 = arith.constant 0 : index
    %3 = memref.load %arg5[%c0_3] : memref<1xf32, #tpu.memory_space<smem>>
    %4 = vector.broadcast %3 : f32 to vector<16x8xf32>
    %5 = arith.mulf %2, %4 : vector<16x8xf32>
    %c0_4 = arith.constant 0 : index
    %c0_5 = arith.constant 0 : index
    %6 = vector.load %arg4[%c0_4, %c0_5] : memref<8x128xf32, #tpu.memory_space<vmem>>, vector<8x128xf32>
    %cst_6 = arith.constant dense<0.000000e+00> : vector<16x128xf32>
    %7 = tpu.matmul %5, %6, %cst_6 {dimension_numbers = #tpu.dot_dimension_numbers<[1], [0], [0], [1], [0, 0, 1, 1], [], []>} : vector<16x8xf32>, vector<8x128xf32>, vector<16x128xf32> -> vector<16x128xf32>
    %c0_7 = arith.constant 0 : index
    %c0_8 = arith.constant 0 : index
    %8 = vector.load %arg6[%c0_7, %c0_8] : memref<16x128xf32, #tpu.memory_space<vmem>>, vector<16x128xf32>
    tpu.vector_store %arg6[%c0_7, %c0_8], %7 {strides = array<i32>} : memref<16x128xf32, #tpu.memory_space<vmem>>, vector<16x128xf32>,
    return
  }
  func.func @transform_0(%arg0: i32, %arg1: i32) -> (i32, i32) {
    %c0_i32 = arith.constant 0 : i32
    %c0_i32_0 = arith.constant 0 : i32
    return %arg0, %c0_i32 : i32, i32
  }
  func.func @transform_1(%arg0: i32, %arg1: i32) -> (i32, i32) {
    %c0_i32 = arith.constant 0 : i32
    %c0_i32_0 = arith.constant 0 : i32
    %c0_i32_1 = arith.constant 0 : i32
    return %c0_i32, %c0_i32_0 : i32, i32
  }
  func.func @transform_2(%arg0: i32, %arg1: i32) -> (i32, i32) {
    %c0_i32 = arith.constant 0 : i32
    %c0_i32_0 = arith.constant 0 : i32
    return %c0_i32, %arg1 : i32, i32
  }
  func.func @transform_3(%arg0: i32, %arg1: i32) -> i32 {
    %c0_i32 = arith.constant 0 : i32
    %c0_i32_0 = arith.constant 0 : i32
    return %c0_i32 : i32
  }
  func.func @transform_4(%arg0: i32, %arg1: i32) -> (i32, i32) {
    %c0_i32 = arith.constant 0 : i32
    return %arg0, %arg1 : i32, i32
  }
}

</mosaic_0001>

<llo_original>
// kernel: lora_forward.1
$region0: #{lora_forward.1}
  #allocation0 [shape = 'u32[]', space=smem, size = 0x4, offset = 0x4, fixed_abs, tag = 'smem constant byte address 0x4 - core index']
  #allocation1 [shape = 'u32[144,128]{1,0:T(1,128)}', space=vmem, size = 0x12000, scoped, tag = 'internal scratch']
  #allocation2 [shape = 'f32[1]{0:T(128)S(6)}', space=smem, size = 0x200, scoped, tag = 'scoped memory for lora_forward.1']
  %s0 = inlined_call_operand.vmem [shape: f32[16,32], index: 0, kind: input, shape index: {}]
  %s1 = inlined_call_operand.vmem [shape: f32[32,8], index: 1, kind: input, shape index: {}]
  %s2 = inlined_call_operand.vmem [shape: f32[8,128], index: 2, kind: input, shape index: {}]
  %s3 = inlined_call_operand.<no memory space> [shape: f32[1], index: 3, kind: input, shape index: {}]
  %s4 = inlined_call_operand.vmem [shape: f32[16,128], index: 4, kind: output, shape index: {}]
  %s5 = sld [smem:[#allocation0]]
  $region26: #{lora_forward.1} parent=0
    _
  %s7 = ssub.s32 1, %s5
  %s8 = scalar_select 0, %s7, %s5
  %9 = sst [smem:[#allocation2]] %s3
  // Predicated region
  $region2: #{lora_forward.1} parent=0 // pred_check
    _
  $region3: #{lora_forward.1} parent=0 // pred_check_branch
    %11 = sbr.rel (0) target = $region5
  $region4: #{lora_forward.1} parent=0 // pred_region
    _
  $region5: #{lora_forward.1} parent=0 // pred_fallthru
    _
  // Predicated region
  $region6: #{lora_forward.1} parent=0 // pred_check
    _
  $region7: #{lora_forward.1} parent=0 // pred_check_branch
    %13 = sbr.rel (0) target = $region9
  $region8: #{lora_forward.1} parent=0 // pred_region
    _
  $region9: #{lora_forward.1} parent=0 // pred_fallthru
    _
  // Predicated region
  $region10: #{lora_forward.1} parent=0 // pred_check
    _
  $region11: #{lora_forward.1} parent=0 // pred_check_branch
    %15 = sbr.rel (0) target = $region13
  $region12: #{lora_forward.1} parent=0 // pred_region
    _
  $region13: #{lora_forward.1} parent=0 // pred_fallthru
    _
  // Predicated region
  $region14: #{lora_forward.1} parent=0 // pred_check
    _
  $region15: #{lora_forward.1} parent=0 // pred_check_branch
    %17 = sbr.rel (0) target = $region17
  $region16: #{lora_forward.1} parent=0 // pred_region
    _
  $region17: #{lora_forward.1} parent=0 // pred_fallthru
    _
  %v18 = vld [vmem:[%s0] sm:$0xff]
  %v19 = vld [vmem:[%s0 + $0x8] sm:$0xff]
  %v20 = vld [vmem:[%s1] sm:$0xff]
  %v21 = vld [vmem:[%s1 + $0x8] sm:$0xff]
  %v22 = vld [vmem:[%s1 + $0x10] sm:$0xff]
  %v23 = vld [vmem:[%s1 + $0x18] sm:$0xff]
  %vm24 = vcmask 261120
  %v26 = vsel %vm24, %v18, 0
  %v29 = vsel %vm24, %v19, 0
  %31 = vmatprep.subr.mxu0 0.0
  %32 = vmatpush1.msra.mxu0 0.0
  %33 = vmatprep.subr.mxu0 0.0
  %34 = vmatpush1.msra.mxu0 0.0
  %35 = vmatprep.subr.mxu0 0.0
  %36 = vmatpush1.msra.mxu0 0.0
  %37 = vmatprep.subr.mxu0 0.0
  %38 = vmatpush1.msra.mxu0 0.0
  %39 = vmatprep.subr.mxu0 0.0
  %40 = vmatpush1.msra.mxu0 0.0
  %41 = vmatprep.subr.mxu0 0.0
  %42 = vmatpush1.msra.mxu0 0.0
  %43 = vmatprep.subr.mxu0 0.0
  %44 = vmatpush1.msra.mxu0 0.0
  %45 = vmatprep.subr.mxu0 0.0
  %46 = vmatpush1.msra.mxu0 0.0
  %47 = vmatprep.subr.mxu0 0.0
  %48 = vmatpush1.msra.mxu0 0.0
  %49 = vmatprep.subr.mxu0 0.0
  %50 = vmatpush1.msra.mxu0 0.0
  %51 = vmatprep.subr.mxu0 0.0
  %52 = vmatpush1.msra.mxu0 0.0
  %53 = vmatprep.subr.mxu0 0.0
  %54 = vmatpush1.msra.mxu0 0.0
  %55 = vmatprep.subr.mxu0 0.0
  %56 = vmatpush1.msra.mxu0 %v23
  %57 = vmatprep.subr.mxu0 0.0
  %58 = vmatpush1.msra.mxu0 %v22
  %59 = vmatprep.subr.mxu0 0.0
  %60 = vmatpush1.msra.mxu0 %v21
  %61 = vmatprep.subr.mxu0 0.0
  %62 = vmatpush1.msra.mxu0 %v20
  %63 = vmatprep.subr.mxu0 0.0
  %64 = vmatpush2.msra.mxu0 0.0
  %65 = vmatprep.subr.mxu0 0.0
  %66 = vmatpush2.msra.mxu0 0.0
  %67 = vmatprep.subr.mxu0 0.0
  %68 = vmatpush2.msra.mxu0 0.0
  %69 = vmatprep.subr.mxu0 0.0
  %70 = vmatpush2.msra.mxu0 0.0
  %71 = vmatprep.subr.mxu0 0.0
  %72 = vmatpush2.msra.mxu0 0.0
  %73 = vmatprep.subr.mxu0 0.0
  %74 = vmatpush2.msra.mxu0 0.0
  %75 = vmatprep.subr.mxu0 0.0
  %76 = vmatpush2.msra.mxu0 0.0
  %77 = vmatprep.subr.mxu0 0.0
  %78 = vmatpush2.msra.mxu0 0.0
  %79 = vmatprep.subr.mxu0 0.0
  %80 = vmatpush2.msra.mxu0 0.0
  %81 = vmatprep.subr.mxu0 0.0
  %82 = vmatpush2.msra.mxu0 0.0
  %83 = vmatprep.subr.mxu0 0.0
  %84 = vmatpush2.msra.mxu0 0.0
  %85 = vmatprep.subr.mxu0 0.0
  %86 = vmatpush2.msra.mxu0 0.0
  %87 = vmatprep.subr.mxu0 0.0
  %88 = vmatpush2.msra.mxu0 0.0
  %89 = vmatprep.subr.mxu0 0.0
  %90 = vmatpush2.msra.mxu0 0.0
  %91 = vmatprep.subr.mxu0 0.0
  %92 = vmatpush2.msra.mxu0 0.0
  %93 = vmatprep.subr.mxu0 0.0
  %94 = vmatpush2.msra.mxu0 0.0
  %95 = vmatprep.mubr.f32.mxu0 0.0
  %96 = vmatmul.mubr.f32.gmra.mxu0 %v26
  %v97 = vpop.f32.mrf.mxu0
  %v98 = vadd.f32 0.0, %v97
  %v99 = vpop.f32.mrf.mxu0
  %100 = vmatprep.mubr.f32.mxu0 0.0
  %101 = vmatmul.mubr.f32.gmra.mxu0 %v29
  %v102 = vpop.f32.mrf.mxu0
  %v103 = vadd.f32 0.0, %v102
  %v104 = vpop.f32.mrf.mxu0
  %105 = vdwg.mxu0
  %s106 = sld [smem:[#allocation2]]
  %v107 = vstv %s106
  %v108 = vmul.f32 %v98, %v107
  %v109 = vmul.f32 %v103, %v107
  %v110 = vld [vmem:[%s2] sm:$0xff]
  %vm111 = vcmask 64512
  %v113 = vsel %vm111, %v108, 0
  %v116 = vsel %vm111, %v109, 0
  %118 = vmatprep.subr.mxu0 0.0
  %119 = vmatpush1.msra.mxu0 0.0
  %120 = vmatprep.subr.mxu0 0.0
  %121 = vmatpush1.msra.mxu0 0.0
  %122 = vmatprep.subr.mxu0 0.0
  %123 = vmatpush1.msra.mxu0 0.0
  %124 = vmatprep.subr.mxu0 0.0
  %125 = vmatpush1.msra.mxu0 0.0
  %126 = vmatprep.subr.mxu0 0.0
  %127 = vmatpush1.msra.mxu0 0.0
  %128 = vmatprep.subr.mxu0 0.0
  %129 = vmatpush1.msra.mxu0 0.0
  %130 = vmatprep.subr.mxu0 0.0
  %131 = vmatpush1.msra.mxu0 0.0
  %132 = vmatprep.subr.mxu0 0.0
  %133 = vmatpush1.msra.mxu0 0.0
  %134 = vmatprep.subr.mxu0 0.0
  %135 = vmatpush1.msra.mxu0 0.0
  %136 = vmatprep.subr.mxu0 0.0
  %137 = vmatpush1.msra.mxu0 0.0
  %138 = vmatprep.subr.mxu0 0.0
  %139 = vmatpush1.msra.mxu0 0.0
  %140 = vmatprep.subr.mxu0 0.0
  %141 = vmatpush1.msra.mxu0 0.0
  %142 = vmatprep.subr.mxu0 0.0
  %143 = vmatpush1.msra.mxu0 0.0
  %144 = vmatprep.subr.mxu0 0.0
  %145 = vmatpush1.msra.mxu0 0.0
  %146 = vmatprep.subr.mxu0 0.0
  %147 = vmatpush1.msra.mxu0 0.0
  %148 = vmatprep.subr.mxu0 0.0
  %149 = vmatpush1.msra.mxu0 %v110
  %150 = vmatprep.subr.mxu0 0.0
  %151 = vmatpush2.msra.mxu0 0.0
  %152 = vmatprep.subr.mxu0 0.0
  %153 = vmatpush2.msra.mxu0 0.0
  %154 = vmatprep.subr.mxu0 0.0
  %155 = vmatpush2.msra.mxu0 0.0
  %156 = vmatprep.subr.mxu0 0.0
  %157 = vmatpush2.msra.mxu0 0.0
  %158 = vmatprep.subr.mxu0 0.0
  %159 = vmatpush2.msra.mxu0 0.0
  %160 = vmatprep.subr.mxu0 0.0
  %161 = vmatpush2.msra.mxu0 0.0
  %162 = vmatprep.subr.mxu0 0.0
  %163 = vmatpush2.msra.mxu0 0.0
  %164 = vmatprep.subr.mxu0 0.0
  %165 = vmatpush2.msra.mxu0 0.0
  %166 = vmatprep.subr.mxu0 0.0
  %167 = vmatpush2.msra.mxu0 0.0
  %168 = vmatprep.subr.mxu0 0.0
  %169 = vmatpush2.msra.mxu0 0.0
  %170 = vmatprep.subr.mxu0 0.0
  %171 = vmatpush2.msra.mxu0 0.0
  %172 = vmatprep.subr.mxu0 0.0
  %173 = vmatpush2.msra.mxu0 0.0
  %174 = vmatprep.subr.mxu0 0.0
  %175 = vmatpush2.msra.mxu0 0.0
  %176 = vmatprep.subr.mxu0 0.0
  %177 = vmatpush2.msra.mxu0 0.0
  %178 = vmatprep.subr.mxu0 0.0
  %179 = vmatpush2.msra.mxu0 0.0
  %180 = vmatprep.subr.mxu0 0.0
  %181 = vmatpush2.msra.mxu0 0.0
  %182 = vmatprep.mubr.f32.mxu0 0.0
  %183 = vmatmul.mubr.f32.gmra.mxu0 %v113
  %v184 = vpop.f32.mrf.mxu0
  %v185 = vadd.f32 0.0, %v184
  %v186 = vpop.f32.mrf.mxu0
  %187 = vmatprep.mubr.f32.mxu0 0.0
  %188 = vmatmul.mubr.f32.gmra.mxu0 %v116
  %v189 = vpop.f32.mrf.mxu0
  %v190 = vadd.f32 0.0, %v189
  %v191 = vpop.f32.mrf.mxu0
  %192 = vdwg.mxu0
  %193 = vst [vmem:[%s4] sm:$0xff] %v185
  %194 = vst [vmem:[%s4 + $0x8] sm:$0xff] %v190
  // Predicated region
  $region18: #{lora_forward.1} parent=0 // pred_check
    _
  $region19: #{lora_forward.1} parent=0 // pred_check_branch
    %196 = sbr.rel (0) target = $region21
  $region20: #{lora_forward.1} parent=0 // pred_region
    _
  $region21: #{lora_forward.1} parent=0 // pred_fallthru
    _
  // Predicated region
  $region22: #{lora_forward.1} parent=0 // pred_check
    _
  $region23: #{lora_forward.1} parent=0 // pred_check_branch
    %198 = sbr.rel (0) target = $region25
  $region24: #{lora_forward.1} parent=0 // pred_region
    _
  $region25: #{lora_forward.1} parent=0 // pred_fallthru
    _

</llo_original>
